<compile_context>
chip_gen: v7x
topology: tpu7x:2x2x1
jax: 0.10.0
libtpu: 0.0.40
codegen_flags: <defaults>
</compile_context>

<pallas_src>
import functools
import math

import jax
import jax.numpy as jnp
from jax.experimental import pallas as pl
from jax.experimental.pallas import tpu as pltpu


# -----------------------------------------------------------------------------
# Kernel 1: write path (default forward), fused T-step rollout.
# -----------------------------------------------------------------------------
def _write_rollout_kernel(h_ref, wt_ref, m0_ref, we_ref, be_ref, wa_ref, ba_ref,
                          m_out_ref):
    t = pl.program_id(0)

    # Memory carry lives in the VMEM-resident output block; initialize once.
    @pl.when(t == 0)
    def _init():
        m_out_ref[...] = m0_ref[...]

    h = h_ref[0]          # (B, H)  controller state for step t
    w_t = wt_ref[0]       # (N, B)  previous attention weights, pre-transposed

    # erase / add vectors: hardtanh[0,1] and clamp(relu,0,1) both == clip(.,0,1)
    e_t = jnp.clip(
        jnp.dot(h, we_ref[...], preferred_element_type=jnp.float32) + be_ref[...],
        0.0, 1.0)                                                    # (B, Mc)
    a_t = jnp.clip(
        jnp.dot(h, wa_ref[...], preferred_element_type=jnp.float32) + ba_ref[...],
        0.0, 1.0)                                                    # (B, Mc)

    # sum_b outer(w_tm1[b], e_t[b]) == w_tm1^T @ e_t   -> clean (N,B)@(B,Mc) MXU op
    mem_erase = jnp.dot(w_t, e_t, preferred_element_type=jnp.float32)  # (N, Mc)
    mem_add = jnp.dot(w_t, a_t, preferred_element_type=jnp.float32)    # (N, Mc)

    m = m_out_ref[...]
    m_out_ref[...] = m * (1.0 - mem_erase) + mem_add


def write_head_rollout(h_seq, w_seq, m_0, w_erase, b_erase, w_add, b_add):
    """Apply WriteHead.forward(get_weights=False) for T steps in ONE pallas_call.

    h_seq : (T, B, H), w_seq : (T, B, N), m_0 : (N, Mc)  ->  m_T : (N, Mc)
    """
    h_seq = h_seq.astype(jnp.float32)
    w_seq = w_seq.astype(jnp.float32)
    m_0 = m_0.astype(jnp.float32)
    T, B, H = h_seq.shape
    N, Mc = m_0.shape

    # Layout plumbing in the wrapper (XLA), not in the kernel: pre-transpose the
    # weights so the batch contraction is a plain (N, B) @ (B, Mc) matmul.
    w_seq_t = jnp.swapaxes(w_seq, 1, 2)                  # (T, N, B)

    const = lambda t: (0, 0)
    return pl.pallas_call(
        _write_rollout_kernel,
        out_shape=jax.ShapeDtypeStruct((N, Mc), jnp.float32),
        grid_spec=pltpu.PrefetchScalarGridSpec(
            num_scalar_prefetch=0,
            grid=(T,),
            in_specs=[
                pl.BlockSpec((1, B, H), lambda t: (t, 0, 0)),   # h_t per step
                pl.BlockSpec((1, N, B), lambda t: (t, 0, 0)),   # w_tm1^T per step
                pl.BlockSpec((N, Mc), const),                   # m_0   (resident)
                pl.BlockSpec((H, Mc), const),                   # W_erase (resident)
                pl.BlockSpec((1, Mc), const),                   # b_erase (resident)
                pl.BlockSpec((H, Mc), const),                   # W_add   (resident)
                pl.BlockSpec((1, Mc), const),                   # b_add   (resident)
            ],
            out_specs=pl.BlockSpec((N, Mc), const),             # memory carry
        ),
        # Reuse m_0's HBM buffer for the output memory state.
        input_output_aliases={2: 0},
        compiler_params=pltpu.CompilerParams(
            dimension_semantics=("arbitrary",)),   # sequential carry over t
    )(h_seq, w_seq_t, m_0,
      w_erase.astype(jnp.float32), b_erase.astype(jnp.float32),
      w_add.astype(jnp.float32), b_add.astype(jnp.float32))


# -----------------------------------------------------------------------------
# Kernel 2: addressing path (get_weights=True).  Only gamma_t reaches the
# output of the original module (see header comment), so this is all that is
# needed to reproduce it exactly, including the underflow->NaN behavior.
# -----------------------------------------------------------------------------
def _head_weights_kernel(h_ref, wg_ref, bg_ref, out_ref, *, n_slots):
    h = h_ref[...]                                                    # (B, H)
    # gamma head as a VPU multiply + reduce (avoid a K=H, N=1 MXU matmul).
    g = jnp.sum(h * wg_ref[...], axis=1, keepdims=True) + bg_ref[...]  # (B, 1)
    gamma_t = 1.0 + jnp.maximum(g, 0.0)
    # (w_tilde + 1e-6) ** gamma with w_tilde == 0  ->  exp(gamma * ln(1e-6))
    p = jnp.exp(gamma_t * jnp.float32(math.log(1e-6)))                 # (B, 1)
    w_row = p / (jnp.float32(n_slots) * p)                             # 1/N or NaN
    out_ref[...] = jnp.broadcast_to(w_row, out_ref.shape)


def head_weights(h_t, w_tm1, w_gamma, b_gamma):
    h_t = h_t.reshape(h_t.shape[0], -1).astype(jnp.float32)
    B = h_t.shape[0]
    N = w_tm1.shape[-1]
    vmem = pl.BlockSpec(memory_space=pltpu.MemorySpace.VMEM)
    return pl.pallas_call(
        functools.partial(_head_weights_kernel, n_slots=N),
        out_shape=jax.ShapeDtypeStruct((B, N), jnp.float32),
        in_specs=[vmem, vmem, vmem],
        out_specs=vmem,
    )(h_t,
      w_gamma.reshape(1, -1).astype(jnp.float32),
      b_gamma.reshape(1, 1).astype(jnp.float32))


def write_head_forward(h_t, w_tm1, m_t, params, get_weights=False):
    """Drop-in equivalent of WriteHead.forward (single step)."""
    h_t = h_t.reshape(h_t.shape[0], -1)
    if get_weights:
        return head_weights(h_t, w_tm1, params["w_gamma"], params["b_gamma"])
    return write_head_rollout(h_t[None], w_tm1[None], m_t,
                              params["w_erase"], params["b_erase"],
                              params["w_add"], params["b_add"])


# -----------------------------------------------------------------------------
if __name__ == "__main__":
    num_hidden = 32
    num_shifts = 3            # shift head only feeds the dead conv path
    memory_dims = (128, 20)
    N, Mc = memory_dims
    B, T = 4, 8               # note: B>=8 would fill f32 sublanes; kept at 4 per module

    key = jax.random.PRNGKey(0)
    k_h, k_w, k_m, k_g, k_e, k_a = jax.random.split(key, 6)

    h_seq = jax.random.normal(k_h, (T, B, num_hidden), jnp.float32)
    w_seq = jax.nn.softmax(
        jax.random.normal(k_w, (T, B, N), jnp.float32), axis=-1)
    m_0 = jax.random.normal(k_m, (N, Mc), jnp.float32)

    bound = 1.0 / math.sqrt(num_hidden)

    def linear_init(k, out_features):
        kw, kb = jax.random.split(k)
        w = jax.random.uniform(kw, (num_hidden, out_features), jnp.float32,
                               -bound, bound)
        b = jax.random.uniform(kb, (1, out_features), jnp.float32, -bound, bound)
        return w, b

    w_gamma, b_gamma = linear_init(k_g, 1)
    w_erase, b_erase = linear_init(k_e, Mc)
    w_add, b_add = linear_init(k_a, Mc)
    params = dict(w_gamma=w_gamma, b_gamma=b_gamma,
                  w_erase=w_erase, b_erase=b_erase,
                  w_add=w_add, b_add=b_add)

    # ---- pure-JAX reference (exact WriteHead.forward semantics) ----
    hi = jax.lax.Precision.HIGHEST

    def ref_write_step(h, w_tm1, m):
        e = jnp.clip(jnp.dot(h, w_erase, precision=hi) + b_erase, 0.0, 1.0)
        a = jnp.clip(jnp.dot(h, w_add, precision=hi) + b_add, 0.0, 1.0)
        mem_erase = jnp.dot(w_tm1.T, e, precision=hi)
        mem_add = jnp.dot(w_tm1.T, a, precision=hi)
        return m * (1.0 - mem_erase) + mem_add

    m_ref = m_0
    for t in range(T):
        m_ref = ref_write_step(h_seq[t], w_seq[t], m_ref)
    m_1_ref = ref_write_step(h_seq[0], w_seq[0], m_0)

    # ---- Pallas: fused T-step rollout (one launch, resident weights/memory) ----
    m_out = jax.block_until_ready(
        write_head_rollout(h_seq, w_seq, m_0, w_erase, b_erase, w_add, b_add))
    assert m_out.shape == (N, Mc)
    assert bool(jnp.all(jnp.isfinite(m_out)))
    assert bool(jnp.allclose(m_out, m_ref, atol=1e-3, rtol=1e-3))

    # ---- Pallas: single default-path step (get_weights=False) ----
    m_1 = jax.block_until_ready(
        write_head_forward(h_seq[0], w_seq[0], m_0, params))
    assert bool(jnp.allclose(m_1, m_1_ref, atol=1e-3, rtol=1e-3))

    # ---- Pallas: addressing path (get_weights=True) ----
    w = jax.block_until_ready(
        write_head_forward(h_seq[0], w_seq[0], m_0, params, get_weights=True))
    assert w.shape == (B, N)
    assert bool(jnp.all(jnp.isfinite(w)))
    assert bool(jnp.allclose(jnp.sum(w, axis=1), 1.0, atol=1e-5))
    # Original module slices the conv zero-padding row -> uniform weights.
    assert bool(jnp.allclose(w, 1.0 / N, atol=1e-5))

    print("KERNEL_OK")
</pallas_src>

<mosaic_0001>
module attributes {stable_mosaic.version = 11 : i64} {
  func.func @_write_rollout_kernel(%arg0: i32, %arg1: memref<1x4x32xf32, #tpu.memory_space<vmem>>, %arg2: memref<1x128x4xf32, #tpu.memory_space<vmem>>, %arg3: memref<128x20xf32, #tpu.memory_space<vmem>>, %arg4: memref<32x20xf32, #tpu.memory_space<vmem>>, %arg5: memref<1x20xf32, #tpu.memory_space<vmem>>, %arg6: memref<32x20xf32, #tpu.memory_space<vmem>>, %arg7: memref<1x20xf32, #tpu.memory_space<vmem>>, %arg8: memref<128x20xf32, #tpu.memory_space<vmem>>) attributes {dimension_semantics = [#tpu.dimension_semantics<arbitrary>], iteration_bounds = array<i64: 8>, scalar_prefetch = 0 : i64, scratch_operands = 0 : i64, tpu.core_type = #tpu.core_type<tc>, window_params = [{transform_indices = @transform_0, window_bounds = array<i64: 1, 4, 32>}, {transform_indices = @transform_1, window_bounds = array<i64: 1, 128, 4>}, {pipeline_mode = #tpu.pipeline_mode<synchronous>, transform_indices = @transform_2, window_bounds = array<i64: 128, 20>}, {pipeline_mode = #tpu.pipeline_mode<synchronous>, transform_indices = @transform_3, window_bounds = array<i64: 32, 20>}, {pipeline_mode = #tpu.pipeline_mode<synchronous>, transform_indices = @transform_4, window_bounds = array<i64: 1, 20>}, {pipeline_mode = #tpu.pipeline_mode<synchronous>, transform_indices = @transform_5, window_bounds = array<i64: 32, 20>}, {pipeline_mode = #tpu.pipeline_mode<synchronous>, transform_indices = @transform_6, window_bounds = array<i64: 1, 20>}, {pipeline_mode = #tpu.pipeline_mode<synchronous>, transform_indices = @transform_7, window_bounds = array<i64: 128, 20>}]} {
    %c0_i32 = arith.constant 0 : i32
    %0 = arith.cmpi eq, %arg0, %c0_i32 : i32
    %1 = arith.extui %0 : i1 to i32
    %c0_i32_0 = arith.constant 0 : i32
    %2 = arith.cmpi ne, %1, %c0_i32_0 : i32
    scf.if %2 {
      %c0_26 = arith.constant 0 : index
      %c0_27 = arith.constant 0 : index
      %33 = vector.load %arg3[%c0_26, %c0_27] : memref<128x20xf32, #tpu.memory_space<vmem>>, vector<128x20xf32>
      %c0_28 = arith.constant 0 : index
      %c0_29 = arith.constant 0 : index
      %34 = vector.load %arg8[%c0_28, %c0_29] : memref<128x20xf32, #tpu.memory_space<vmem>>, vector<128x20xf32>
      tpu.vector_store %arg8[%c0_28, %c0_29], %33 {strides = array<i32>} : memref<128x20xf32, #tpu.memory_space<vmem>>, vector<128x20xf32>,
    } else {
    }
    %c0 = arith.constant 0 : index
    %c0_1 = arith.constant 0 : index
    %c0_2 = arith.constant 0 : index
    %3 = vector.load %arg1[%c0, %c0_1, %c0_2] : memref<1x4x32xf32, #tpu.memory_space<vmem>>, vector<1x4x32xf32>
    %4 = vector.shape_cast %3 : vector<1x4x32xf32> to vector<4x32xf32>
    %c0_3 = arith.constant 0 : index
    %c0_4 = arith.constant 0 : index
    %c0_5 = arith.constant 0 : index
    %5 = vector.load %arg2[%c0_3, %c0_4, %c0_5] : memref<1x128x4xf32, #tpu.memory_space<vmem>>, vector<1x128x4xf32>
    %6 = vector.shape_cast %5 : vector<1x128x4xf32> to vector<128x4xf32>
    %c0_6 = arith.constant 0 : index
    %c0_7 = arith.constant 0 : index
    %7 = vector.load %arg4[%c0_6, %c0_7] : memref<32x20xf32, #tpu.memory_space<vmem>>, vector<32x20xf32>
    %cst = arith.constant dense<0.000000e+00> : vector<4x20xf32>
    %8 = tpu.matmul %4, %7, %cst {dimension_numbers = #tpu.dot_dimension_numbers<[1], [0], [0], [1], [0, 0, 1, 1], [], []>} : vector<4x32xf32>, vector<32x20xf32>, vector<4x20xf32> -> vector<4x20xf32>
    %c0_8 = arith.constant 0 : index
    %c0_9 = arith.constant 0 : index
    %9 = vector.load %arg5[%c0_8, %c0_9] : memref<1x20xf32, #tpu.memory_space<vmem>>, vector<1x20xf32>
    %10 = vector.broadcast %9 : vector<1x20xf32> to vector<4x20xf32>
    %11 = arith.addf %8, %10 : vector<4x20xf32>
    %cst_10 = arith.constant 0.000000e+00 : f32
    %cst_11 = arith.constant 1.000000e+00 : f32
    %12 = vector.broadcast %cst_10 : f32 to vector<4x20xf32>
    %13 = arith.maximumf %12, %11 : vector<4x20xf32>
    %14 = vector.broadcast %cst_11 : f32 to vector<4x20xf32>
    %15 = arith.minimumf %14, %13 : vector<4x20xf32>
    %c0_12 = arith.constant 0 : index
    %c0_13 = arith.constant 0 : index
    %16 = vector.load %arg6[%c0_12, %c0_13] : memref<32x20xf32, #tpu.memory_space<vmem>>, vector<32x20xf32>
    %cst_14 = arith.constant dense<0.000000e+00> : vector<4x20xf32>
    %17 = tpu.matmul %4, %16, %cst_14 {dimension_numbers = #tpu.dot_dimension_numbers<[1], [0], [0], [1], [0, 0, 1, 1], [], []>} : vector<4x32xf32>, vector<32x20xf32>, vector<4x20xf32> -> vector<4x20xf32>
    %c0_15 = arith.constant 0 : index
    %c0_16 = arith.constant 0 : index
    %18 = vector.load %arg7[%c0_15, %c0_16] : memref<1x20xf32, #tpu.memory_space<vmem>>, vector<1x20xf32>
    %19 = vector.broadcast %18 : vector<1x20xf32> to vector<4x20xf32>
    %20 = arith.addf %17, %19 : vector<4x20xf32>
    %cst_17 = arith.constant 0.000000e+00 : f32
    %cst_18 = arith.constant 1.000000e+00 : f32
    %21 = vector.broadcast %cst_17 : f32 to vector<4x20xf32>
    %22 = arith.maximumf %21, %20 : vector<4x20xf32>
    %23 = vector.broadcast %cst_18 : f32 to vector<4x20xf32>
    %24 = arith.minimumf %23, %22 : vector<4x20xf32>
    %cst_19 = arith.constant dense<0.000000e+00> : vector<128x20xf32>
    %25 = tpu.matmul %6, %15, %cst_19 {dimension_numbers = #tpu.dot_dimension_numbers<[1], [0], [0], [1], [0, 0, 1, 1], [], []>} : vector<128x4xf32>, vector<4x20xf32>, vector<128x20xf32> -> vector<128x20xf32>
    %cst_20 = arith.constant dense<0.000000e+00> : vector<128x20xf32>
    %26 = tpu.matmul %6, %24, %cst_20 {dimension_numbers = #tpu.dot_dimension_numbers<[1], [0], [0], [1], [0, 0, 1, 1], [], []>} : vector<128x4xf32>, vector<4x20xf32>, vector<128x20xf32> -> vector<128x20xf32>
    %c0_21 = arith.constant 0 : index
    %c0_22 = arith.constant 0 : index
    %27 = vector.load %arg8[%c0_21, %c0_22] : memref<128x20xf32, #tpu.memory_space<vmem>>, vector<128x20xf32>
    %cst_23 = arith.constant 1.000000e+00 : f32
    %28 = vector.broadcast %cst_23 : f32 to vector<128x20xf32>
    %29 = arith.subf %28, %25 : vector<128x20xf32>
    %30 = arith.mulf %27, %29 : vector<128x20xf32>
    %31 = arith.addf %30, %26 : vector<128x20xf32>
    %c0_24 = arith.constant 0 : index
    %c0_25 = arith.constant 0 : index
    %32 = vector.load %arg8[%c0_24, %c0_25] : memref<128x20xf32, #tpu.memory_space<vmem>>, vector<128x20xf32>
    tpu.vector_store %arg8[%c0_24, %c0_25], %31 {strides = array<i32>} : memref<128x20xf32, #tpu.memory_space<vmem>>, vector<128x20xf32>,
    return
  }
  func.func @transform_0(%arg0: i32) -> (i32, i32, i32) {
    %c0_i32 = arith.constant 0 : i32
    %c0_i32_0 = arith.constant 0 : i32
    %c0_i32_1 = arith.constant 0 : i32
    return %arg0, %c0_i32, %c0_i32_0 : i32, i32, i32
  }
  func.func @transform_1(%arg0: i32) -> (i32, i32, i32) {
    %c0_i32 = arith.constant 0 : i32
    %c0_i32_0 = arith.constant 0 : i32
    %c0_i32_1 = arith.constant 0 : i32
    return %arg0, %c0_i32, %c0_i32_0 : i32, i32, i32
  }
  func.func @transform_2(%arg0: i32) -> (i32, i32) {
    %c0_i32 = arith.constant 0 : i32
    %c0_i32_0 = arith.constant 0 : i32
    %c0_i32_1 = arith.constant 0 : i32
    return %c0_i32, %c0_i32_0 : i32, i32
  }
  func.func @transform_3(%arg0: i32) -> (i32, i32) {
    %c0_i32 = arith.constant 0 : i32
    %c0_i32_0 = arith.constant 0 : i32
    %c0_i32_1 = arith.constant 0 : i32
    return %c0_i32, %c0_i32_0 : i32, i32
  }
  func.func @transform_4(%arg0: i32) -> (i32, i32) {
    %c0_i32 = arith.constant 0 : i32
    %c0_i32_0 = arith.constant 0 : i32
    %c0_i32_1 = arith.constant 0 : i32
    return %c0_i32, %c0_i32_0 : i32, i32
  }
  func.func @transform_5(%arg0: i32) -> (i32, i32) {
    %c0_i32 = arith.constant 0 : i32
    %c0_i32_0 = arith.constant 0 : i32
    %c0_i32_1 = arith.constant 0 : i32
    return %c0_i32, %c0_i32_0 : i32, i32
  }
  func.func @transform_6(%arg0: i32) -> (i32, i32) {
    %c0_i32 = arith.constant 0 : i32
    %c0_i32_0 = arith.constant 0 : i32
    %c0_i32_1 = arith.constant 0 : i32
    return %c0_i32, %c0_i32_0 : i32, i32
  }
  func.func @transform_7(%arg0: i32) -> (i32, i32) {
    %c0_i32 = arith.constant 0 : i32
    %c0_i32_0 = arith.constant 0 : i32
    %c0_i32_1 = arith.constant 0 : i32
    return %c0_i32, %c0_i32_0 : i32, i32
  }
}

</mosaic_0001>

<llo_original>
// kernel: tpu_custom_call.1
$region0: #{tpu_custom_call.1}
  #allocation0 [shape = 'u32[]', space=smem, size = 0x4, offset = 0x4, fixed_abs, tag = 'smem constant byte address 0x4 - core index']
  #allocation1 [shape = 'u32[144,128]{1,0:T(1,128)}', space=vmem, size = 0x12000, scoped, tag = 'internal scratch']
  %s0 = inlined_call_operand.vmem [shape: f32[8,4,32], index: 0, kind: input, shape index: {}]
  %s1 = inlined_call_operand.vmem [shape: f32[8,128,4], index: 1, kind: input, shape index: {}]
  %s2 = inlined_call_operand.vmem [shape: f32[128,20], index: 2, kind: input, shape index: {}, may-alias: {2,7}]
  %s3 = inlined_call_operand.vmem [shape: f32[32,20], index: 3, kind: input, shape index: {}]
  %s4 = inlined_call_operand.vmem [shape: f32[1,20], index: 4, kind: input, shape index: {}]
  %s5 = inlined_call_operand.vmem [shape: f32[32,20], index: 5, kind: input, shape index: {}]
  %s6 = inlined_call_operand.vmem [shape: f32[1,20], index: 6, kind: input, shape index: {}]
  %s7 = inlined_call_operand.vmem [shape: f32[128,20], index: 7, kind: output, shape index: {}, may-alias: {2,7}]
  %s8 = sld [smem:[#allocation0]]
  $region65: #{tpu_custom_call.1} parent=0
    _
  %s10 = ssub.s32 1, %s8
  %s11 = scalar_select 0, %s10, %s8
  loop: start=0, step=1, limit=10
  $region2: #{tpu_custom_call.1} parent=0 // loop_pre_header
    _
  $region3: #{tpu_custom_call.1} parent=0 // loop_header
    %s13 = sphi 0, %s17
    %p14 = scmp.ge.s32.totalorder %s13, 10
    %s23 = sphi 0, %s25
    %s26 = sphi 0, %s23
    %s27 = sphi 0, %s26
    %s43 = sphi 0, %s27
    %s49 = sphi 0, %s51
    %s52 = sphi 0, %s49
    %s53 = sphi 0, %s52
    %s69 = sphi 0, %s53
    %s73 = sphi 0, %s73
    %s75 = sphi 0, %s73
    %s76 = sphi 0, %s75
    %s90 = sphi 0, %s76
    %s94 = sphi 0, %s94
    %s96 = sphi 0, %s94
    %s97 = sphi 0, %s96
    %s111 = sphi 0, %s97
    %s115 = sphi 0, %s115
    %s117 = sphi 0, %s115
    %s118 = sphi 0, %s117
    %s132 = sphi 0, %s118
    %s136 = sphi 0, %s136
    %s138 = sphi 0, %s136
    %s139 = sphi 0, %s138
    %s153 = sphi 0, %s139
    %s157 = sphi 0, %s157
    %s159 = sphi 0, %s157
    %s160 = sphi 0, %s159
    %s174 = sphi 0, %s160
    %s178 = sphi 0, %s178
    %s180 = sphi 0, %s178
    %s181 = sphi 0, %s180
    %s195 = sphi 0, %s181
  $region4: #{tpu_custom_call.1} parent=0 // loop_header_branch
    %16 = sbr.rel (%p14) target = $region8
  $region5: #{tpu_custom_call.1} parent=0 // loop_body
    %s18 = ssub.s32 %s13, 1
    %s19 = ssub.s32 %s13, 2
    %s20 = sadd.s32 %s13, 1
    %s21 = ssub.s32 %s13, %s20
    %p22 = scmp.eq.s32.totalorder %s21, 0
    %s24 = sadd.s32 %s23, 1
    %s25 = scalar_select %p22, %s23, %s24
    %p28 = pneg %p22
    %p29 = scmp.eq.s32.totalorder %s13, 7
    %p30 = por %p28, %p29
    %p31 = scmp.ne.s32.totalorder %s23, %s26
    %p32 = scmp.eq.s32.totalorder %s13, 0
    %p33 = por %p31, %p32
    %p34 = scmp.ne.s32.totalorder %s23, %s26
    %p35 = scmp.eq.s32.totalorder %s18, 7
    %p36 = por %p34, %p35
    %p37 = scmp.ne.s32.totalorder %s26, %s27
    %p38 = scmp.eq.s32.totalorder %s18, 0
    %p39 = por %p37, %p38
    %p40 = scmp.ne.s32.totalorder %s26, %s27
    %p41 = scmp.eq.s32.totalorder %s19, 7
    %p42 = por %p40, %p41
    %p44 = scmp.ne.s32.totalorder %s27, %s43
    %p45 = scmp.eq.s32.totalorder %s19, 0
    %p46 = por %p44, %p45
    %s47 = ssub.s32 %s13, %s20
    %p48 = scmp.eq.s32.totalorder %s47, 0
    %s50 = sadd.s32 %s49, 1
    %s51 = scalar_select %p48, %s49, %s50
    %p54 = pneg %p48
    %p55 = scmp.eq.s32.totalorder %s13, 7
    %p56 = por %p54, %p55
    %p57 = scmp.ne.s32.totalorder %s49, %s52
    %p58 = scmp.eq.s32.totalorder %s13, 0
    %p59 = por %p57, %p58
    %p60 = scmp.ne.s32.totalorder %s49, %s52
    %p61 = scmp.eq.s32.totalorder %s18, 7
    %p62 = por %p60, %p61
    %p63 = scmp.ne.s32.totalorder %s52, %s53
    %p64 = scmp.eq.s32.totalorder %s18, 0
    %p65 = por %p63, %p64
    %p66 = scmp.ne.s32.totalorder %s52, %s53
    %p67 = scmp.eq.s32.totalorder %s19, 7
    %p68 = por %p66, %p67
    %p70 = scmp.ne.s32.totalorder %s53, %s69
    %p71 = scmp.eq.s32.totalorder %s19, 0
    %p72 = por %p70, %p71
    %s74 = sadd.s32 %s73, 1
    %p77 = scmp.eq.s32.totalorder %s13, 7
    %p78 = scmp.ne.s32.totalorder %s73, %s75
    %p79 = scmp.eq.s32.totalorder %s13, 0
    %p80 = por %p78, %p79
    %p81 = scmp.ne.s32.totalorder %s73, %s75
    %p82 = scmp.eq.s32.totalorder %s18, 7
    %p83 = por %p81, %p82
    %p84 = scmp.ne.s32.totalorder %s75, %s76
    %p85 = scmp.eq.s32.totalorder %s18, 0
    %p86 = por %p84, %p85
    %p87 = scmp.ne.s32.totalorder %s75, %s76
    %p88 = scmp.eq.s32.totalorder %s19, 7
    %p89 = por %p87, %p88
    %p91 = scmp.ne.s32.totalorder %s76, %s90
    %p92 = scmp.eq.s32.totalorder %s19, 0
    %p93 = por %p91, %p92
    %s95 = sadd.s32 %s94, 1
    %p98 = scmp.eq.s32.totalorder %s13, 7
    %p99 = scmp.ne.s32.totalorder %s94, %s96
    %p100 = scmp.eq.s32.totalorder %s13, 0
    %p101 = por %p99, %p100
    %p102 = scmp.ne.s32.totalorder %s94, %s96
    %p103 = scmp.eq.s32.totalorder %s18, 7
    %p104 = por %p102, %p103
    %p105 = scmp.ne.s32.totalorder %s96, %s97
    %p106 = scmp.eq.s32.totalorder %s18, 0
    %p107 = por %p105, %p106
    %p108 = scmp.ne.s32.totalorder %s96, %s97
    %p109 = scmp.eq.s32.totalorder %s19, 7
    %p110 = por %p108, %p109
    %p112 = scmp.ne.s32.totalorder %s97, %s111
    %p113 = scmp.eq.s32.totalorder %s19, 0
    %p114 = por %p112, %p113
    %s116 = sadd.s32 %s115, 1
    %p119 = scmp.eq.s32.totalorder %s13, 7
    %p120 = scmp.ne.s32.totalorder %s115, %s117
    %p121 = scmp.eq.s32.totalorder %s13, 0
    %p122 = por %p120, %p121
    %p123 = scmp.ne.s32.totalorder %s115, %s117
    %p124 = scmp.eq.s32.totalorder %s18, 7
    %p125 = por %p123, %p124
    %p126 = scmp.ne.s32.totalorder %s117, %s118
    %p127 = scmp.eq.s32.totalorder %s18, 0
    %p128 = por %p126, %p127
    %p129 = scmp.ne.s32.totalorder %s117, %s118
    %p130 = scmp.eq.s32.totalorder %s19, 7
    %p131 = por %p129, %p130
    %p133 = scmp.ne.s32.totalorder %s118, %s132
    %p134 = scmp.eq.s32.totalorder %s19, 0
    %p135 = por %p133, %p134
    %s137 = sadd.s32 %s136, 1
    %p140 = scmp.eq.s32.totalorder %s13, 7
    %p141 = scmp.ne.s32.totalorder %s136, %s138
    %p142 = scmp.eq.s32.totalorder %s13, 0
    %p143 = por %p141, %p142
    %p144 = scmp.ne.s32.totalorder %s136, %s138
    %p145 = scmp.eq.s32.totalorder %s18, 7
    %p146 = por %p144, %p145
    %p147 = scmp.ne.s32.totalorder %s138, %s139
    %p148 = scmp.eq.s32.totalorder %s18, 0
    %p149 = por %p147, %p148
    %p150 = scmp.ne.s32.totalorder %s138, %s139
    %p151 = scmp.eq.s32.totalorder %s19, 7
    %p152 = por %p150, %p151
    %p154 = scmp.ne.s32.totalorder %s139, %s153
    %p155 = scmp.eq.s32.totalorder %s19, 0
    %p156 = por %p154, %p155
    %s158 = sadd.s32 %s157, 1
    %p161 = scmp.eq.s32.totalorder %s13, 7
    %p162 = scmp.ne.s32.totalorder %s157, %s159
    %p163 = scmp.eq.s32.totalorder %s13, 0
    %p164 = por %p162, %p163
    %p165 = scmp.ne.s32.totalorder %s157, %s159
    %p166 = scmp.eq.s32.totalorder %s18, 7
    %p167 = por %p165, %p166
    %p168 = scmp.ne.s32.totalorder %s159, %s160
    %p169 = scmp.eq.s32.totalorder %s18, 0
    %p170 = por %p168, %p169
    %p171 = scmp.ne.s32.totalorder %s159, %s160
    %p172 = scmp.eq.s32.totalorder %s19, 7
    %p173 = por %p171, %p172
    %p175 = scmp.ne.s32.totalorder %s160, %s174
    %p176 = scmp.eq.s32.totalorder %s19, 0
    %p177 = por %p175, %p176
    %s179 = sadd.s32 %s178, 1
    %p182 = scmp.eq.s32.totalorder %s13, 7
    %p183 = scmp.ne.s32.totalorder %s178, %s180
    %p184 = scmp.eq.s32.totalorder %s13, 0
    %p185 = por %p183, %p184
    %p186 = scmp.ne.s32.totalorder %s178, %s180
    %p187 = scmp.eq.s32.totalorder %s18, 7
    %p188 = por %p186, %p187
    %p189 = scmp.ne.s32.totalorder %s180, %s181
    %p190 = scmp.eq.s32.totalorder %s18, 0
    %p191 = por %p189, %p190
    %p192 = scmp.ne.s32.totalorder %s180, %s181
    %p193 = scmp.eq.s32.totalorder %s19, 7
    %p194 = por %p192, %p193
    %p196 = scmp.ne.s32.totalorder %s181, %s195
    %p197 = scmp.eq.s32.totalorder %s19, 0
    %p198 = por %p196, %p197
    %p199 = scmp.le.s32.totalorder 1, %s13
    %p200 = scmp.lt.s32.totalorder %s13, 9
    %p201 = pnand %p199, %p200
    %p202 = pneg %p201
    // Predicated region
    $region9: #{tpu_custom_call.1} parent=5 // pred_check
      _
    $region10: #{tpu_custom_call.1} parent=5 // pred_check_branch
      %204 = sbr.rel (%p201) target = $region12
    $region11: #{tpu_custom_call.1} parent=5 // pred_region
      %s205 = ssub.s32 %s13, 1
      // Predicated region
      $region13: #{tpu_custom_call.1} parent=11 // pred_check
        %p206 = pneg %p86
      $region14: #{tpu_custom_call.1} parent=11 // pred_check_branch
        %208 = sbr.rel (%p206) target = $region16
      $region15: #{tpu_custom_call.1} parent=11 // pred_region
        _
      $region16: #{tpu_custom_call.1} parent=11 // pred_fallthru
        _
      // Predicated region
      $region17: #{tpu_custom_call.1} parent=11 // pred_check
        %p209 = pneg %p107
      $region18: #{tpu_custom_call.1} parent=11 // pred_check_branch
        %211 = sbr.rel (%p209) target = $region20
      $region19: #{tpu_custom_call.1} parent=11 // pred_region
        _
      $region20: #{tpu_custom_call.1} parent=11 // pred_fallthru
        _
      // Predicated region
      $region21: #{tpu_custom_call.1} parent=11 // pred_check
        %p212 = pneg %p128
      $region22: #{tpu_custom_call.1} parent=11 // pred_check_branch
        %214 = sbr.rel (%p212) target = $region24
      $region23: #{tpu_custom_call.1} parent=11 // pred_region
        _
      $region24: #{tpu_custom_call.1} parent=11 // pred_fallthru
        _
      // Predicated region
      $region25: #{tpu_custom_call.1} parent=11 // pred_check
        %p215 = pneg %p149
      $region26: #{tpu_custom_call.1} parent=11 // pred_check_branch
        %217 = sbr.rel (%p215) target = $region28
      $region27: #{tpu_custom_call.1} parent=11 // pred_region
        _
      $region28: #{tpu_custom_call.1} parent=11 // pred_fallthru
        _
      // Predicated region
      $region29: #{tpu_custom_call.1} parent=11 // pred_check
        %p218 = pneg %p170
      $region30: #{tpu_custom_call.1} parent=11 // pred_check_branch
        %220 = sbr.rel (%p218) target = $region32
      $region31: #{tpu_custom_call.1} parent=11 // pred_region
        _
      $region32: #{tpu_custom_call.1} parent=11 // pred_fallthru
        _
    $region12: #{tpu_custom_call.1} parent=5 // pred_fallthru
      _
    %p221 = scmp.lt.s32.totalorder %s13, 8
    // Predicated region
    $region33: #{tpu_custom_call.1} parent=5 // pred_check
      %p222 = pneg %p221
    $region34: #{tpu_custom_call.1} parent=5 // pred_check_branch
      %224 = sbr.rel (%p222) target = $region36
    $region35: #{tpu_custom_call.1} parent=5 // pred_region
      // Predicated region
      $region37: #{tpu_custom_call.1} parent=35 // pred_check
        %p225 = pneg %p33
      $region38: #{tpu_custom_call.1} parent=35 // pred_check_branch
        %227 = sbr.rel (%p225) target = $region40
      $region39: #{tpu_custom_call.1} parent=35 // pred_region
        %p228 = scmp.lt.s32.totalorder %s13, 7
        %s229 = scalar_select %p228, %s13, 7
        %s230 = smul.addr %s229, 4
        %s231 = scalar_lea.vmem %s0, %s230
      $region40: #{tpu_custom_call.1} parent=35 // pred_fallthru
        _
      // Predicated region
      $region41: #{tpu_custom_call.1} parent=35 // pred_check
        %p232 = pneg %p59
      $region42: #{tpu_custom_call.1} parent=35 // pred_check_branch
        %234 = sbr.rel (%p232) target = $region44
      $region43: #{tpu_custom_call.1} parent=35 // pred_region
        %p235 = scmp.lt.s32.totalorder %s13, 7
        %s236 = scalar_select %p235, %s13, 7
        %s237 = smul.addr %s236, 16
        %s238 = smul.addr %s237, 8
        %s239 = scalar_lea.vmem %s1, %s238
      $region44: #{tpu_custom_call.1} parent=35 // pred_fallthru
        _
    $region36: #{tpu_custom_call.1} parent=5 // pred_fallthru
      _
    %p240 = scmp.le.s32.totalorder 1, %s13
    %p241 = scmp.lt.s32.totalorder %s13, 9
    %p242 = pnand %p240, %p241
    %p243 = pneg %p242
    // Predicated region
    $region45: #{tpu_custom_call.1} parent=5 // pred_check
      _
    $region46: #{tpu_custom_call.1} parent=5 // pred_check_branch
      %245 = sbr.rel (%p242) target = $region48
    $region47: #{tpu_custom_call.1} parent=5 // pred_region
      %s246 = ssub.s32 %s13, 1
      %p247 = scmp.lt.s32.totalorder %s18, 7
      %s248 = scalar_select %p247, %s18, 7
      %s249 = smul.addr %s248, 4
      %s250 = scalar_lea.vmem %s0, %s249
      %p251 = pneg %p39
      %p252 = pneg %p36
      %p253 = scmp.lt.s32.totalorder %s18, 7
      %s254 = scalar_select %p253, %s18, 7
      %s255 = smul.addr %s254, 16
      %s256 = smul.addr %s255, 8
      %s257 = scalar_lea.vmem %s1, %s256
      %p258 = pneg %p65
      %p259 = pneg %p62
      %p260 = pneg %p86
      %p261 = pneg %p83
      %p262 = pneg %p107
      %p263 = pneg %p104
      %p264 = pneg %p128
      %p265 = pneg %p125
      %p266 = pneg %p149
      %p267 = pneg %p146
      %p268 = pneg %p170
      %p269 = pneg %p167
      %p270 = pneg %p191
      %p271 = pneg %p188
      %p272 = scmp.lt.s32.totalorder %s18, 7
      %s273 = scalar_select %p272, %s18, 7
      %s274 = smul.addr %s273, 4
      %s275 = scalar_lea.vmem %s0, %s274
      %p276 = scmp.lt.s32.totalorder %s18, 7
      %s277 = scalar_select %p276, %s18, 7
      %s278 = smul.addr %s277, 16
      %s279 = smul.addr %s278, 8
      %s280 = scalar_lea.vmem %s1, %s279
      %p281 = scmp.eq.s32.totalorder %s18, 0
      // Predicated region
      $region49: #{tpu_custom_call.1} parent=47 // pred_check
        %p282 = pneg %p281
      $region50: #{tpu_custom_call.1} parent=47 // pred_check_branch
        %284 = sbr.rel (%p282) target = $region52
      $region51: #{tpu_custom_call.1} parent=47 // pred_region
        %v285 = vld [vmem:[%s2] sm:$0xff]
        %v286 = vld [vmem:[%s2 + $0x8] sm:$0xff]
        %v287 = vld [vmem:[%s2 + $0x10] sm:$0xff]
        %v288 = vld [vmem:[%s2 + $0x18] sm:$0xff]
        %v289 = vld [vmem:[%s2 + $0x20] sm:$0xff]
        %v290 = vld [vmem:[%s2 + $0x28] sm:$0xff]
        %v291 = vld [vmem:[%s2 + $0x30] sm:$0xff]
        %v292 = vld [vmem:[%s2 + $0x38] sm:$0xff]
        %v293 = vld [vmem:[%s2 + $0x40] sm:$0xff]
        %v294 = vld [vmem:[%s2 + $0x48] sm:$0xff]
        %v295 = vld [vmem:[%s2 + $0x50] sm:$0xff]
        %v296 = vld [vmem:[%s2 + $0x58] sm:$0xff]
        %v297 = vld [vmem:[%s2 + $0x60] sm:$0xff]
        %v298 = vld [vmem:[%s2 + $0x68] sm:$0xff]
        %v299 = vld [vmem:[%s2 + $0x70] sm:$0xff]
        %v300 = vld [vmem:[%s2 + $0x78] sm:$0xff]
        %vm301 = vcmask 162816
        %302 = vst.msk [vmem:[%s7] sm:$0xff] %vm301, %v285
        %303 = vst.msk [vmem:[%s7 + $0x8] sm:$0xff] %vm301, %v286
        %304 = vst.msk [vmem:[%s7 + $0x10] sm:$0xff] %vm301, %v287
        %305 = vst.msk [vmem:[%s7 + $0x18] sm:$0xff] %vm301, %v288
        %306 = vst.msk [vmem:[%s7 + $0x20] sm:$0xff] %vm301, %v289
        %307 = vst.msk [vmem:[%s7 + $0x28] sm:$0xff] %vm301, %v290
        %308 = vst.msk [vmem:[%s7 + $0x30] sm:$0xff] %vm301, %v291
        %309 = vst.msk [vmem:[%s7 + $0x38] sm:$0xff] %vm301, %v292
        %310 = vst.msk [vmem:[%s7 + $0x40] sm:$0xff] %vm301, %v293
        %311 = vst.msk [vmem:[%s7 + $0x48] sm:$0xff] %vm301, %v294
        %312 = vst.msk [vmem:[%s7 + $0x50] sm:$0xff] %vm301, %v295
        %313 = vst.msk [vmem:[%s7 + $0x58] sm:$0xff] %vm301, %v296
        %314 = vst.msk [vmem:[%s7 + $0x60] sm:$0xff] %vm301, %v297
        %315 = vst.msk [vmem:[%s7 + $0x68] sm:$0xff] %vm301, %v298
        %316 = vst.msk [vmem:[%s7 + $0x70] sm:$0xff] %vm301, %v299
        %317 = vst.msk [vmem:[%s7 + $0x78] sm:$0xff] %vm301, %v300
      $region52: #{tpu_custom_call.1} parent=47 // pred_fallthru
        _
      %v318 = vld [vmem:[%s275] sm:$0xf]
      %v319 = vld [vmem:[%s280] sm:$0xff]
      %v320 = vld [vmem:[%s280 + $0x8] sm:$0xff]
      %v321 = vld [vmem:[%s280 + $0x10] sm:$0xff]
      %v322 = vld [vmem:[%s280 + $0x18] sm:$0xff]
      %v323 = vld [vmem:[%s280 + $0x20] sm:$0xff]
      %v324 = vld [vmem:[%s280 + $0x28] sm:$0xff]
      %v325 = vld [vmem:[%s280 + $0x30] sm:$0xff]
      %v326 = vld [vmem:[%s280 + $0x38] sm:$0xff]
      %v327 = vld [vmem:[%s280 + $0x40] sm:$0xff]
      %v328 = vld [vmem:[%s280 + $0x48] sm:$0xff]
      %v329 = vld [vmem:[%s280 + $0x50] sm:$0xff]
      %v330 = vld [vmem:[%s280 + $0x58] sm:$0xff]
      %v331 = vld [vmem:[%s280 + $0x60] sm:$0xff]
      %v332 = vld [vmem:[%s280 + $0x68] sm:$0xff]
      %v333 = vld [vmem:[%s280 + $0x70] sm:$0xff]
      %v334 = vld [vmem:[%s280 + $0x78] sm:$0xff]
      %v335 = vld [vmem:[%s3] sm:$0xff]
      %v336 = vld [vmem:[%s3 + $0x8] sm:$0xff]
      %v337 = vld [vmem:[%s3 + $0x10] sm:$0xff]
      %v338 = vld [vmem:[%s3 + $0x18] sm:$0xff]
      %v339 = vld [vmem:[%s4] sm:$0x1]
      %v341 = vlaneseq
      %v342 = vshrl.u32 %v341, 7
      %v343 = vsub.s32 0, %v342
      %v344 = vrot.slane %v339, %v343
      %vm346 = vcmask 261120
      %v348 = vsel %vm346, %v318, 0
      %350 = vmatprep.subr.mxu0 0.0
      %351 = vmatpush1.msra.mxu0 %v335
      %352 = vmatprep.subr.mxu0 0.0
      %353 = vmatpush1.msra.mxu0 %v336
      %354 = vmatprep.subr.mxu0 0.0
      %355 = vmatpush1.msra.mxu0 %v337
      %356 = vmatprep.subr.mxu0 0.0
      %357 = vmatpush1.msra.mxu0 %v338
      %358 = vmatprep.subr.mxu0 0.0
      %359 = vmatpush1.msra.mxu0 0.0
      %360 = vmatprep.subr.mxu0 0.0
      %361 = vmatpush1.msra.mxu0 0.0
      %362 = vmatprep.subr.mxu0 0.0
      %363 = vmatpush1.msra.mxu0 0.0
      %364 = vmatprep.subr.mxu0 0.0
      %365 = vmatpush1.msra.mxu0 0.0
      %366 = vmatprep.subr.mxu0 0.0
      %367 = vmatpush1.msra.mxu0 0.0
      %368 = vmatprep.subr.mxu0 0.0
      %369 = vmatpush1.msra.mxu0 0.0
      %370 = vmatprep.subr.mxu0 0.0
      %371 = vmatpush1.msra.mxu0 0.0
      %372 = vmatprep.subr.mxu0 0.0
      %373 = vmatpush1.msra.mxu0 0.0
      %374 = vmatprep.subr.mxu0 0.0
      %375 = vmatpush1.msra.mxu0 0.0
      %376 = vmatprep.subr.mxu0 0.0
      %377 = vmatpush1.msra.mxu0 0.0
      %378 = vmatprep.subr.mxu0 0.0
      %379 = vmatpush1.msra.mxu0 0.0
      %380 = vmatprep.subr.mxu0 0.0
      %381 = vmatpush1.msra.mxu0 0.0
      %382 = vmatprep.subr.mxu0 0.0
      %383 = vmatpush1.msra.mxu0 0.0
      %384 = vmatprep.subr.mxu0 0.0
      %385 = vmatpush1.msra.mxu0 0.0
      %386 = vmatprep.subr.mxu0 0.0
      %387 = vmatpush1.msra.mxu0 0.0
      %388 = vmatprep.subr.mxu0 0.0
      %389 = vmatpush1.msra.mxu0 0.0
      %390 = vmatprep.subr.mxu0 0.0
      %391 = vmatpush1.msra.mxu0 0.0
      %392 = vmatprep.subr.mxu0 0.0
      %393 = vmatpush1.msra.mxu0 0.0
      %394 = vmatprep.subr.mxu0 0.0
      %395 = vmatpush1.msra.mxu0 0.0
      %396 = vmatprep.subr.mxu0 0.0
      %397 = vmatpush1.msra.mxu0 0.0
      %398 = vmatprep.subr.mxu0 0.0
      %399 = vmatpush1.msra.mxu0 0.0
      %400 = vmatprep.subr.mxu0 0.0
      %401 = vmatpush1.msra.mxu0 0.0
      %402 = vmatprep.subr.mxu0 0.0
      %403 = vmatpush1.msra.mxu0 0.0
      %404 = vmatprep.subr.mxu0 0.0
      %405 = vmatpush1.msra.mxu0 0.0
      %406 = vmatprep.subr.mxu0 0.0
      %407 = vmatpush1.msra.mxu0 0.0
      %408 = vmatprep.subr.mxu0 0.0
      %409 = vmatpush1.msra.mxu0 0.0
      %410 = vmatprep.subr.mxu0 0.0
      %411 = vmatpush1.msra.mxu0 0.0
      %412 = vmatprep.subr.mxu0 0.0
      %413 = vmatpush1.msra.mxu0 0.0
      %414 = vmatprep.mubr.f32.mxu0 0.0
      %415 = vmatmul.mubr.f32.gmra.mrb[0].mxu0 %v348
      %v416 = vpop.f32.mrb[0].mxu0
      %v417 = vadd.f32 %v344, %v416
      %v418 = vpop.f32.mrb[0].mxu0
      %419 = vdwg.mxu0
      %v420 = vmax.f32 %v417, 0.0
      %v421 = vmin.f32 %v420, 1.0
      %v422 = vld [vmem:[%s5] sm:$0xff]
      %v423 = vld [vmem:[%s5 + $0x8] sm:$0xff]
      %v424 = vld [vmem:[%s5 + $0x10] sm:$0xff]
      %v425 = vld [vmem:[%s5 + $0x18] sm:$0xff]
      %v426 = vld [vmem:[%s6] sm:$0x1]
      %v428 = vlaneseq
      %v429 = vshrl.u32 %v428, 7
      %v430 = vsub.s32 0, %v429
      %v431 = vrot.slane %v426, %v430
      %433 = vmatprep.subr.mxu0 0.0
      %434 = vmatpush1.msra.mxu0 %v422
      %435 = vmatprep.subr.mxu0 0.0
      %436 = vmatpush1.msra.mxu0 %v423
      %437 = vmatprep.subr.mxu0 0.0
      %438 = vmatpush1.msra.mxu0 %v424
      %439 = vmatprep.subr.mxu0 0.0
      %440 = vmatpush1.msra.mxu0 %v425
      %441 = vmatprep.subr.mxu0 0.0
      %442 = vmatpush1.msra.mxu0 0.0
      %443 = vmatprep.subr.mxu0 0.0
      %444 = vmatpush1.msra.mxu0 0.0
      %445 = vmatprep.subr.mxu0 0.0
      %446 = vmatpush1.msra.mxu0 0.0
      %447 = vmatprep.subr.mxu0 0.0
      %448 = vmatpush1.msra.mxu0 0.0
      %449 = vmatprep.subr.mxu0 0.0
      %450 = vmatpush1.msra.mxu0 0.0
      %451 = vmatprep.subr.mxu0 0.0
      %452 = vmatpush1.msra.mxu0 0.0
      %453 = vmatprep.subr.mxu0 0.0
      %454 = vmatpush1.msra.mxu0 0.0
      %455 = vmatprep.subr.mxu0 0.0
      %456 = vmatpush1.msra.mxu0 0.0
      %457 = vmatprep.subr.mxu0 0.0
      %458 = vmatpush1.msra.mxu0 0.0
      %459 = vmatprep.subr.mxu0 0.0
      %460 = vmatpush1.msra.mxu0 0.0
      %461 = vmatprep.subr.mxu0 0.0
      %462 = vmatpush1.msra.mxu0 0.0
      %463 = vmatprep.subr.mxu0 0.0
      %464 = vmatpush1.msra.mxu0 0.0
      %465 = vmatprep.subr.mxu0 0.0
      %466 = vmatpush1.msra.mxu0 0.0
      %467 = vmatprep.subr.mxu0 0.0
      %468 = vmatpush1.msra.mxu0 0.0
      %469 = vmatprep.subr.mxu0 0.0
      %470 = vmatpush1.msra.mxu0 0.0
      %471 = vmatprep.subr.mxu0 0.0
      %472 = vmatpush1.msra.mxu0 0.0
      %473 = vmatprep.subr.mxu0 0.0
      %474 = vmatpush1.msra.mxu0 0.0
      %475 = vmatprep.subr.mxu0 0.0
      %476 = vmatpush1.msra.mxu0 0.0
      %477 = vmatprep.subr.mxu0 0.0
      %478 = vmatpush1.msra.mxu0 0.0
      %479 = vmatprep.subr.mxu0 0.0
      %480 = vmatpush1.msra.mxu0 0.0
      %481 = vmatprep.subr.mxu0 0.0
      %482 = vmatpush1.msra.mxu0 0.0
      %483 = vmatprep.subr.mxu0 0.0
      %484 = vmatpush1.msra.mxu0 0.0
      %485 = vmatprep.subr.mxu0 0.0
      %486 = vmatpush1.msra.mxu0 0.0
      %487 = vmatprep.subr.mxu0 0.0
      %488 = vmatpush1.msra.mxu0 0.0
      %489 = vmatprep.subr.mxu0 0.0
      %490 = vmatpush1.msra.mxu0 0.0
      %491 = vmatprep.subr.mxu0 0.0
      %492 = vmatpush1.msra.mxu0 0.0
      %493 = vmatprep.subr.mxu0 0.0
      %494 = vmatpush1.msra.mxu0 0.0
      %495 = vmatprep.subr.mxu0 0.0
      %496 = vmatpush1.msra.mxu0 0.0
      %497 = vmatprep.mubr.f32.mxu0 0.0
      %498 = vmatmul.mubr.f32.gmra.mrb[0].mxu0 %v348
      %v499 = vpop.f32.mrb[0].mxu0
      %v500 = vadd.f32 %v431, %v499
      %v501 = vpop.f32.mrb[0].mxu0
      %502 = vdwg.mxu0
      %v503 = vmax.f32 %v500, 0.0
      %v504 = vmin.f32 %v503, 1.0
      %vm505 = vcmask 31744
      %v507 = vsel %vm505, %v319, 0
      %v510 = vsel %vm505, %v320, 0
      %v513 = vsel %vm505, %v321, 0
      %v516 = vsel %vm505, %v322, 0
      %v519 = vsel %vm505, %v323, 0
      %v522 = vsel %vm505, %v324, 0
      %v525 = vsel %vm505, %v325, 0
      %v528 = vsel %vm505, %v326, 0
      %v531 = vsel %vm505, %v327, 0
      %v534 = vsel %vm505, %v328, 0
      %v537 = vsel %vm505, %v329, 0
      %v540 = vsel %vm505, %v330, 0
      %v543 = vsel %vm505, %v331, 0
      %v546 = vsel %vm505, %v332, 0
      %v549 = vsel %vm505, %v333, 0
      %v552 = vsel %vm505, %v334, 0
      %vm554 = vcmask 1043456
      %v556 = vsel %vm554, %v421, 0
      %558 = vmatprep.subr.mxu0 0.0
      %559 = vmatpush1.msra.mxu0 %v556
      %560 = vmatprep.subr.mxu0 0.0
      %561 = vmatpush1.msra.mxu0 0.0
      %562 = vmatprep.subr.mxu0 0.0
      %563 = vmatpush1.msra.mxu0 0.0
      %564 = vmatprep.subr.mxu0 0.0
      %565 = vmatpush1.msra.mxu0 0.0
      %566 = vmatprep.subr.mxu0 0.0
      %567 = vmatpush1.msra.mxu0 0.0
      %568 = vmatprep.subr.mxu0 0.0
      %569 = vmatpush1.msra.mxu0 0.0
      %570 = vmatprep.subr.mxu0 0.0
      %571 = vmatpush1.msra.mxu0 0.0
      %572 = vmatprep.subr.mxu0 0.0
      %573 = vmatpush1.msra.mxu0 0.0
      %574 = vmatprep.subr.mxu0 0.0
      %575 = vmatpush1.msra.mxu0 0.0
      %576 = vmatprep.subr.mxu0 0.0
      %577 = vmatpush1.msra.mxu0 0.0
      %578 = vmatprep.subr.mxu0 0.0
      %579 = vmatpush1.msra.mxu0 0.0
      %580 = vmatprep.subr.mxu0 0.0
      %581 = vmatpush1.msra.mxu0 0.0
      %582 = vmatprep.subr.mxu0 0.0
      %583 = vmatpush1.msra.mxu0 0.0
      %584 = vmatprep.subr.mxu0 0.0
      %585 = vmatpush1.msra.mxu0 0.0
      %586 = vmatprep.subr.mxu0 0.0
      %587 = vmatpush1.msra.mxu0 0.0
      %588 = vmatprep.subr.mxu0 0.0
      %589 = vmatpush1.msra.mxu0 0.0
      %590 = vmatprep.subr.mxu0 0.0
      %591 = vmatpush1.msra.mxu0 0.0
      %592 = vmatprep.subr.mxu0 0.0
      %593 = vmatpush1.msra.mxu0 0.0
      %594 = vmatprep.subr.mxu0 0.0
      %595 = vmatpush1.msra.mxu0 0.0
      %596 = vmatprep.subr.mxu0 0.0
      %597 = vmatpush1.msra.mxu0 0.0
      %598 = vmatprep.subr.mxu0 0.0
      %599 = vmatpush1.msra.mxu0 0.0
      %600 = vmatprep.subr.mxu0 0.0
      %601 = vmatpush1.msra.mxu0 0.0
      %602 = vmatprep.subr.mxu0 0.0
      %603 = vmatpush1.msra.mxu0 0.0
      %604 = vmatprep.subr.mxu0 0.0
      %605 = vmatpush1.msra.mxu0 0.0
      %606 = vmatprep.subr.mxu0 0.0
      %607 = vmatpush1.msra.mxu0 0.0
      %608 = vmatprep.subr.mxu0 0.0
      %609 = vmatpush1.msra.mxu0 0.0
      %610 = vmatprep.subr.mxu0 0.0
      %611 = vmatpush1.msra.mxu0 0.0
      %612 = vmatprep.subr.mxu0 0.0
      %613 = vmatpush1.msra.mxu0 0.0
      %614 = vmatprep.subr.mxu0 0.0
      %615 = vmatpush1.msra.mxu0 0.0
      %616 = vmatprep.subr.mxu0 0.0
      %617 = vmatpush1.msra.mxu0 0.0
      %618 = vmatprep.subr.mxu0 0.0
      %619 = vmatpush1.msra.mxu0 0.0
      %620 = vmatprep.subr.mxu0 0.0
      %621 = vmatpush1.msra.mxu0 0.0
      %622 = vmatprep.mubr.f32.mxu0 0.0
      %623 = vmatmul.mubr.f32.gmra.mrb[0].mxu0 %v507
      %v624 = vpop.f32.mrb[0].mxu0
      %v625 = vadd.f32 0.0, %v624
      %v626 = vpop.f32.mrb[0].mxu0
      %627 = vmatprep.mubr.f32.mxu0 0.0
      %628 = vmatmul.mubr.f32.gmra.mrb[0].mxu0 %v510
      %v629 = vpop.f32.mrb[0].mxu0
      %v630 = vadd.f32 0.0, %v629
      %v631 = vpop.f32.mrb[0].mxu0
      %632 = vmatprep.mubr.f32.mxu0 0.0
      %633 = vmatmul.mubr.f32.gmra.mrb[0].mxu0 %v513
      %v634 = vpop.f32.mrb[0].mxu0
      %v635 = vadd.f32 0.0, %v634
      %v636 = vpop.f32.mrb[0].mxu0
      %637 = vmatprep.mubr.f32.mxu0 0.0
      %638 = vmatmul.mubr.f32.gmra.mrb[0].mxu0 %v516
      %v639 = vpop.f32.mrb[0].mxu0
      %v640 = vadd.f32 0.0, %v639
      %v641 = vpop.f32.mrb[0].mxu0
      %642 = vmatprep.mubr.f32.mxu0 0.0
      %643 = vmatmul.mubr.f32.gmra.mrb[0].mxu0 %v519
      %v644 = vpop.f32.mrb[0].mxu0
      %v645 = vadd.f32 0.0, %v644
      %v646 = vpop.f32.mrb[0].mxu0
      %647 = vmatprep.mubr.f32.mxu0 0.0
      %648 = vmatmul.mubr.f32.gmra.mrb[0].mxu0 %v522
      %v649 = vpop.f32.mrb[0].mxu0
      %v650 = vadd.f32 0.0, %v649
      %v651 = vpop.f32.mrb[0].mxu0
      %652 = vmatprep.mubr.f32.mxu0 0.0
      %653 = vmatmul.mubr.f32.gmra.mrb[0].mxu0 %v525
      %v654 = vpop.f32.mrb[0].mxu0
      %v655 = vadd.f32 0.0, %v654
      %v656 = vpop.f32.mrb[0].mxu0
      %657 = vmatprep.mubr.f32.mxu0 0.0
      %658 = vmatmul.mubr.f32.gmra.mrb[0].mxu0 %v528
      %v659 = vpop.f32.mrb[0].mxu0
      %v660 = vadd.f32 0.0, %v659
      %v661 = vpop.f32.mrb[0].mxu0
      %662 = vmatprep.mubr.f32.mxu0 0.0
      %663 = vmatmul.mubr.f32.gmra.mrb[0].mxu0 %v531
      %v664 = vpop.f32.mrb[0].mxu0
      %v665 = vadd.f32 0.0, %v664
      %v666 = vpop.f32.mrb[0].mxu0
      %667 = vmatprep.mubr.f32.mxu0 0.0
      %668 = vmatmul.mubr.f32.gmra.mrb[0].mxu0 %v534
      %v669 = vpop.f32.mrb[0].mxu0
      %v670 = vadd.f32 0.0, %v669
      %v671 = vpop.f32.mrb[0].mxu0
      %672 = vmatprep.mubr.f32.mxu0 0.0
      %673 = vmatmul.mubr.f32.gmra.mrb[0].mxu0 %v537
      %v674 = vpop.f32.mrb[0].mxu0
      %v675 = vadd.f32 0.0, %v674
      %v676 = vpop.f32.mrb[0].mxu0
      %677 = vmatprep.mubr.f32.mxu0 0.0
      %678 = vmatmul.mubr.f32.gmra.mrb[0].mxu0 %v540
      %v679 = vpop.f32.mrb[0].mxu0
      %v680 = vadd.f32 0.0, %v679
      %v681 = vpop.f32.mrb[0].mxu0
      %682 = vmatprep.mubr.f32.mxu0 0.0
      %683 = vmatmul.mubr.f32.gmra.mrb[0].mxu0 %v543
      %v684 = vpop.f32.mrb[0].mxu0
      %v685 = vadd.f32 0.0, %v684
      %v686 = vpop.f32.mrb[0].mxu0
      %687 = vmatprep.mubr.f32.mxu0 0.0
      %688 = vmatmul.mubr.f32.gmra.mrb[0].mxu0 %v546
      %v689 = vpop.f32.mrb[0].mxu0
      %v690 = vadd.f32 0.0, %v689
      %v691 = vpop.f32.mrb[0].mxu0
      %692 = vmatprep.mubr.f32.mxu0 0.0
      %693 = vmatmul.mubr.f32.gmra.mrb[0].mxu0 %v549
      %v694 = vpop.f32.mrb[0].mxu0
      %v695 = vadd.f32 0.0, %v694
      %v696 = vpop.f32.mrb[0].mxu0
      %697 = vmatprep.mubr.f32.mxu0 0.0
      %698 = vmatmul.mubr.f32.gmra.mrb[0].mxu0 %v552
      %v699 = vpop.f32.mrb[0].mxu0
      %v700 = vadd.f32 0.0, %v699
      %v701 = vpop.f32.mrb[0].mxu0
      %702 = vdwg.mxu0
      %v704 = vsel %vm554, %v504, 0
      %706 = vmatprep.subr.mxu0 0.0
      %707 = vmatpush1.msra.mxu0 %v704
      %708 = vmatprep.subr.mxu0 0.0
      %709 = vmatpush1.msra.mxu0 0.0
      %710 = vmatprep.subr.mxu0 0.0
      %711 = vmatpush1.msra.mxu0 0.0
      %712 = vmatprep.subr.mxu0 0.0
      %713 = vmatpush1.msra.mxu0 0.0
      %714 = vmatprep.subr.mxu0 0.0
      %715 = vmatpush1.msra.mxu0 0.0
      %716 = vmatprep.subr.mxu0 0.0
      %717 = vmatpush1.msra.mxu0 0.0
      %718 = vmatprep.subr.mxu0 0.0
      %719 = vmatpush1.msra.mxu0 0.0
      %720 = vmatprep.subr.mxu0 0.0
      %721 = vmatpush1.msra.mxu0 0.0
      %722 = vmatprep.subr.mxu0 0.0
      %723 = vmatpush1.msra.mxu0 0.0
      %724 = vmatprep.subr.mxu0 0.0
      %725 = vmatpush1.msra.mxu0 0.0
      %726 = vmatprep.subr.mxu0 0.0
      %727 = vmatpush1.msra.mxu0 0.0
      %728 = vmatprep.subr.mxu0 0.0
      %729 = vmatpush1.msra.mxu0 0.0
      %730 = vmatprep.subr.mxu0 0.0
      %731 = vmatpush1.msra.mxu0 0.0
      %732 = vmatprep.subr.mxu0 0.0
      %733 = vmatpush1.msra.mxu0 0.0
      %734 = vmatprep.subr.mxu0 0.0
      %735 = vmatpush1.msra.mxu0 0.0
      %736 = vmatprep.subr.mxu0 0.0
      %737 = vmatpush1.msra.mxu0 0.0
      %738 = vmatprep.subr.mxu0 0.0
      %739 = vmatpush1.msra.mxu0 0.0
      %740 = vmatprep.subr.mxu0 0.0
      %741 = vmatpush1.msra.mxu0 0.0
      %742 = vmatprep.subr.mxu0 0.0
      %743 = vmatpush1.msra.mxu0 0.0
      %744 = vmatprep.subr.mxu0 0.0
      %745 = vmatpush1.msra.mxu0 0.0
      %746 = vmatprep.subr.mxu0 0.0
      %747 = vmatpush1.msra.mxu0 0.0
      %748 = vmatprep.subr.mxu0 0.0
      %749 = vmatpush1.msra.mxu0 0.0
      %750 = vmatprep.subr.mxu0 0.0
      %751 = vmatpush1.msra.mxu0 0.0
      %752 = vmatprep.subr.mxu0 0.0
      %753 = vmatpush1.msra.mxu0 0.0
      %754 = vmatprep.subr.mxu0 0.0
      %755 = vmatpush1.msra.mxu0 0.0
      %756 = vmatprep.subr.mxu0 0.0
      %757 = vmatpush1.msra.mxu0 0.0
      %758 = vmatprep.subr.mxu0 0.0
      %759 = vmatpush1.msra.mxu0 0.0
      %760 = vmatprep.subr.mxu0 0.0
      %761 = vmatpush1.msra.mxu0 0.0
      %762 = vmatprep.subr.mxu0 0.0
      %763 = vmatpush1.msra.mxu0 0.0
      %764 = vmatprep.subr.mxu0 0.0
      %765 = vmatpush1.msra.mxu0 0.0
      %766 = vmatprep.subr.mxu0 0.0
      %767 = vmatpush1.msra.mxu0 0.0
      %768 = vmatprep.subr.mxu0 0.0
      %769 = vmatpush1.msra.mxu0 0.0
      %770 = vmatprep.mubr.f32.mxu0 0.0
      %771 = vmatmul.mubr.f32.gmra.mrb[0].mxu0 %v507
      %v772 = vpop.f32.mrb[0].mxu0
      %v773 = vadd.f32 0.0, %v772
      %v774 = vpop.f32.mrb[0].mxu0
      %775 = vmatprep.mubr.f32.mxu0 0.0
      %776 = vmatmul.mubr.f32.gmra.mrb[0].mxu0 %v510
      %v777 = vpop.f32.mrb[0].mxu0
      %v778 = vadd.f32 0.0, %v777
      %v779 = vpop.f32.mrb[0].mxu0
      %780 = vmatprep.mubr.f32.mxu0 0.0
      %781 = vmatmul.mubr.f32.gmra.mrb[0].mxu0 %v513
      %v782 = vpop.f32.mrb[0].mxu0
      %v783 = vadd.f32 0.0, %v782
      %v784 = vpop.f32.mrb[0].mxu0
      %785 = vmatprep.mubr.f32.mxu0 0.0
      %786 = vmatmul.mubr.f32.gmra.mrb[0].mxu0 %v516
      %v787 = vpop.f32.mrb[0].mxu0
      %v788 = vadd.f32 0.0, %v787
      %v789 = vpop.f32.mrb[0].mxu0
      %790 = vmatprep.mubr.f32.mxu0 0.0
      %791 = vmatmul.mubr.f32.gmra.mrb[0].mxu0 %v519
      %v792 = vpop.f32.mrb[0].mxu0
      %v793 = vadd.f32 0.0, %v792
      %v794 = vpop.f32.mrb[0].mxu0
      %795 = vmatprep.mubr.f32.mxu0 0.0
      %796 = vmatmul.mubr.f32.gmra.mrb[0].mxu0 %v522
      %v797 = vpop.f32.mrb[0].mxu0
      %v798 = vadd.f32 0.0, %v797
      %v799 = vpop.f32.mrb[0].mxu0
      %800 = vmatprep.mubr.f32.mxu0 0.0
      %801 = vmatmul.mubr.f32.gmra.mrb[0].mxu0 %v525
      %v802 = vpop.f32.mrb[0].mxu0
      %v803 = vadd.f32 0.0, %v802
      %v804 = vpop.f32.mrb[0].mxu0
      %805 = vmatprep.mubr.f32.mxu0 0.0
      %806 = vmatmul.mubr.f32.gmra.mrb[0].mxu0 %v528
      %v807 = vpop.f32.mrb[0].mxu0
      %v808 = vadd.f32 0.0, %v807
      %v809 = vpop.f32.mrb[0].mxu0
      %810 = vmatprep.mubr.f32.mxu0 0.0
      %811 = vmatmul.mubr.f32.gmra.mrb[0].mxu0 %v531
      %v812 = vpop.f32.mrb[0].mxu0
      %v813 = vadd.f32 0.0, %v812
      %v814 = vpop.f32.mrb[0].mxu0
      %815 = vmatprep.mubr.f32.mxu0 0.0
      %816 = vmatmul.mubr.f32.gmra.mrb[0].mxu0 %v534
      %v817 = vpop.f32.mrb[0].mxu0
      %v818 = vadd.f32 0.0, %v817
      %v819 = vpop.f32.mrb[0].mxu0
      %820 = vmatprep.mubr.f32.mxu0 0.0
      %821 = vmatmul.mubr.f32.gmra.mrb[0].mxu0 %v537
      %v822 = vpop.f32.mrb[0].mxu0
      %v823 = vadd.f32 0.0, %v822
      %v824 = vpop.f32.mrb[0].mxu0
      %825 = vmatprep.mubr.f32.mxu0 0.0
      %826 = vmatmul.mubr.f32.gmra.mrb[0].mxu0 %v540
      %v827 = vpop.f32.mrb[0].mxu0
      %v828 = vadd.f32 0.0, %v827
      %v829 = vpop.f32.mrb[0].mxu0
      %830 = vmatprep.mubr.f32.mxu0 0.0
      %831 = vmatmul.mubr.f32.gmra.mrb[0].mxu0 %v543
      %v832 = vpop.f32.mrb[0].mxu0
      %v833 = vadd.f32 0.0, %v832
      %v834 = vpop.f32.mrb[0].mxu0
      %835 = vmatprep.mubr.f32.mxu0 0.0
      %836 = vmatmul.mubr.f32.gmra.mrb[0].mxu0 %v546
      %v837 = vpop.f32.mrb[0].mxu0
      %v838 = vadd.f32 0.0, %v837
      %v839 = vpop.f32.mrb[0].mxu0
      %840 = vmatprep.mubr.f32.mxu0 0.0
      %841 = vmatmul.mubr.f32.gmra.mrb[0].mxu0 %v549
      %v842 = vpop.f32.mrb[0].mxu0
      %v843 = vadd.f32 0.0, %v842
      %v844 = vpop.f32.mrb[0].mxu0
      %845 = vmatprep.mubr.f32.mxu0 0.0
      %846 = vmatmul.mubr.f32.gmra.mrb[0].mxu0 %v552
      %v847 = vpop.f32.mrb[0].mxu0
      %v848 = vadd.f32 0.0, %v847
      %v849 = vpop.f32.mrb[0].mxu0
      %850 = vdwg.mxu0
      %v851 = vld [vmem:[%s7] sm:$0xff]
      %v852 = vld [vmem:[%s7 + $0x8] sm:$0xff]
      %v853 = vld [vmem:[%s7 + $0x10] sm:$0xff]
      %v854 = vld [vmem:[%s7 + $0x18] sm:$0xff]
      %v855 = vld [vmem:[%s7 + $0x20] sm:$0xff]
      %v856 = vld [vmem:[%s7 + $0x28] sm:$0xff]
      %v857 = vld [vmem:[%s7 + $0x30] sm:$0xff]
      %v858 = vld [vmem:[%s7 + $0x38] sm:$0xff]
      %v859 = vld [vmem:[%s7 + $0x40] sm:$0xff]
      %v860 = vld [vmem:[%s7 + $0x48] sm:$0xff]
      %v861 = vld [vmem:[%s7 + $0x50] sm:$0xff]
      %v862 = vld [vmem:[%s7 + $0x58] sm:$0xff]
      %v863 = vld [vmem:[%s7 + $0x60] sm:$0xff]
      %v864 = vld [vmem:[%s7 + $0x68] sm:$0xff]
      %v865 = vld [vmem:[%s7 + $0x70] sm:$0xff]
      %v866 = vld [vmem:[%s7 + $0x78] sm:$0xff]
      %v867 = vsub.f32 1.0, %v625
      %v868 = vsub.f32 1.0, %v630
      %v869 = vsub.f32 1.0, %v635
      %v870 = vsub.f32 1.0, %v640
      %v871 = vsub.f32 1.0, %v645
      %v872 = vsub.f32 1.0, %v650
      %v873 = vsub.f32 1.0, %v655
      %v874 = vsub.f32 1.0, %v660
      %v875 = vsub.f32 1.0, %v665
      %v876 = vsub.f32 1.0, %v670
      %v877 = vsub.f32 1.0, %v675
      %v878 = vsub.f32 1.0, %v680
      %v879 = vsub.f32 1.0, %v685
      %v880 = vsub.f32 1.0, %v690
      %v881 = vsub.f32 1.0, %v695
      %v882 = vsub.f32 1.0, %v700
      %v883 = vmul.f32 %v851, %v867
      %v884 = vmul.f32 %v852, %v868
      %v885 = vmul.f32 %v853, %v869
      %v886 = vmul.f32 %v854, %v870
      %v887 = vmul.f32 %v855, %v871
      %v888 = vmul.f32 %v856, %v872
      %v889 = vmul.f32 %v857, %v873
      %v890 = vmul.f32 %v858, %v874
      %v891 = vmul.f32 %v859, %v875
      %v892 = vmul.f32 %v860, %v876
      %v893 = vmul.f32 %v861, %v877
      %v894 = vmul.f32 %v862, %v878
      %v895 = vmul.f32 %v863, %v879
      %v896 = vmul.f32 %v864, %v880
      %v897 = vmul.f32 %v865, %v881
      %v898 = vmul.f32 %v866, %v882
      %v899 = vadd.f32 %v883, %v773
      %v900 = vadd.f32 %v884, %v778
      %v901 = vadd.f32 %v885, %v783
      %v902 = vadd.f32 %v886, %v788
      %v903 = vadd.f32 %v887, %v793
      %v904 = vadd.f32 %v888, %v798
      %v905 = vadd.f32 %v889, %v803
      %v906 = vadd.f32 %v890, %v808
      %v907 = vadd.f32 %v891, %v813
      %v908 = vadd.f32 %v892, %v818
      %v909 = vadd.f32 %v893, %v823
      %v910 = vadd.f32 %v894, %v828
      %v911 = vadd.f32 %v895, %v833
      %v912 = vadd.f32 %v896, %v838
      %v913 = vadd.f32 %v897, %v843
      %v914 = vadd.f32 %v898, %v848
      %vm915 = vcmask 162816
      %916 = vst.msk [vmem:[%s7] sm:$0xff] %vm915, %v899
      %917 = vst.msk [vmem:[%s7 + $0x8] sm:$0xff] %vm915, %v900
      %918 = vst.msk [vmem:[%s7 + $0x10] sm:$0xff] %vm915, %v901
      %919 = vst.msk [vmem:[%s7 + $0x18] sm:$0xff] %vm915, %v902
      %920 = vst.msk [vmem:[%s7 + $0x20] sm:$0xff] %vm915, %v903
      %921 = vst.msk [vmem:[%s7 + $0x28] sm:$0xff] %vm915, %v904
      %922 = vst.msk [vmem:[%s7 + $0x30] sm:$0xff] %vm915, %v905
      %923 = vst.msk [vmem:[%s7 + $0x38] sm:$0xff] %vm915, %v906
      %924 = vst.msk [vmem:[%s7 + $0x40] sm:$0xff] %vm915, %v907
      %925 = vst.msk [vmem:[%s7 + $0x48] sm:$0xff] %vm915, %v908
      %926 = vst.msk [vmem:[%s7 + $0x50] sm:$0xff] %vm915, %v909
      %927 = vst.msk [vmem:[%s7 + $0x58] sm:$0xff] %vm915, %v910
      %928 = vst.msk [vmem:[%s7 + $0x60] sm:$0xff] %vm915, %v911
      %929 = vst.msk [vmem:[%s7 + $0x68] sm:$0xff] %vm915, %v912
      %930 = vst.msk [vmem:[%s7 + $0x70] sm:$0xff] %vm915, %v913
      %931 = vst.msk [vmem:[%s7 + $0x78] sm:$0xff] %vm915, %v914
      // Predicated region
      $region53: #{tpu_custom_call.1} parent=47 // pred_check
        %p932 = pneg %p188
      $region54: #{tpu_custom_call.1} parent=47 // pred_check_branch
        %934 = sbr.rel (%p932) target = $region56
      $region55: #{tpu_custom_call.1} parent=47 // pred_region
        _
      $region56: #{tpu_custom_call.1} parent=47 // pred_fallthru
        _
      // Predicated region
      $region57: #{tpu_custom_call.1} parent=47 // pred_check
        %p935 = pneg %p188
      $region58: #{tpu_custom_call.1} parent=47 // pred_check_branch
        %937 = sbr.rel (%p935) target = $region60
      $region59: #{tpu_custom_call.1} parent=47 // pred_region
        _
      $region60: #{tpu_custom_call.1} parent=47 // pred_fallthru
        _
    $region48: #{tpu_custom_call.1} parent=5 // pred_fallthru
      _
    %p938 = scmp.le.s32.totalorder 2, %s13
    // Predicated region
    $region61: #{tpu_custom_call.1} parent=5 // pred_check
      %p939 = pneg %p938
    $region62: #{tpu_custom_call.1} parent=5 // pred_check_branch
      %941 = sbr.rel (%p939) target = $region64
    $region63: #{tpu_custom_call.1} parent=5 // pred_region
      %s942 = ssub.s32 %s13, 2
    $region64: #{tpu_custom_call.1} parent=5 // pred_fallthru
      _
  $region6: #{tpu_custom_call.1} parent=0 // loop_footer
    %s17 = sadd.s32 1, %s13
  $region7: #{tpu_custom_call.1} parent=0 // loop_footer_branch
    %12 = sbr.rel target = $region3
  $region8: #{tpu_custom_call.1} parent=0 // loop_exit
    _

</llo_original>
